<compile_context>
chip_gen: v7x
topology: tpu7x:2x2x1
jax: 0.10.0
libtpu: 0.0.40
codegen_flags: <defaults>
</compile_context>

<pallas_src>
import jax
import jax.numpy as jnp
from jax import lax
from jax.experimental import pallas as pl
from jax.experimental.pallas import tpu as pltpu

NEG_SLOPE = 0.2


def _round_up(x, m):
    return (x + m - 1) // m * m


# ---------------------------------------------------------------------------
# Kernels
# ---------------------------------------------------------------------------
def _fc_kernel_f32(x_ref, w_ref, b_ref, o_ref):
    """f32 output: accumulate directly into the resident output block."""
    # x_ref: (TM, TK)  w_ref: (TN, TK)  b_ref: (1, TN)  o_ref: (TM, TN) f32
    k = pl.program_id(2)

    @pl.when(k == 0)
    def _():
        o_ref[...] = jnp.zeros_like(o_ref)

    # x @ W.T without any host-side transpose: contract dim 1 of both.
    o_ref[...] += lax.dot_general(
        x_ref[...], w_ref[...],
        dimension_numbers=(((1,), (1,)), ((), ())),
        preferred_element_type=jnp.float32)

    @pl.when(k == pl.num_programs(2) - 1)
    def _():
        z = o_ref[...] + b_ref[...].astype(jnp.float32)
        o_ref[...] = jnp.where(z > 0, z, NEG_SLOPE * z)     # LeakyReLU(0.2)


def _fc_kernel_acc(x_ref, w_ref, b_ref, o_ref, acc_ref):
    """Non-f32 output: f32 VMEM accumulator, cast on the last K step."""
    k = pl.program_id(2)

    @pl.when(k == 0)
    def _():
        acc_ref[...] = jnp.zeros_like(acc_ref)

    acc_ref[...] += lax.dot_general(
        x_ref[...], w_ref[...],
        dimension_numbers=(((1,), (1,)), ((), ())),
        preferred_element_type=jnp.float32)

    @pl.when(k == pl.num_programs(2) - 1)
    def _():
        z = acc_ref[...] + b_ref[...].astype(jnp.float32)
        o_ref[...] = jnp.where(z > 0, z, NEG_SLOPE * z).astype(o_ref.dtype)


# ---------------------------------------------------------------------------
# Tile selection (generation aware)
# ---------------------------------------------------------------------------
def _vmem_budget_bytes():
    # ~60% of physical VMEM, capped: ~38 MiB on v7x (64 MiB phys),
    # up to 96 MiB on v5e/v6e (128 MiB phys).
    try:
        cap = int(getattr(pltpu.get_tpu_info(), "vmem_capacity_bytes",
                          64 * 1024 * 1024))
    except Exception:  # e.g. interpret mode / non-TPU trace
        cap = 64 * 1024 * 1024
    return min(int(cap * 0.6), 96 * 1024 * 1024)


def _choose_tiles(M, K, N, itemsize, budget):
    Mp8 = _round_up(M, 8)
    Kp128 = _round_up(K, 128)
    Np128 = _round_up(N, 128)

    # tn / tk: large, 256-friendly (2x256x256 MXU on v6e/v7x), clamped to the
    # lane-rounded problem so small shapes don't over-pad.
    tk = min(1024, Kp128)
    tn = min(512, Np128)
    # Moderate M: whole (8-rounded) M in a single tile so the full weight is
    # streamed from HBM exactly once.  Large M: 512-row tiles.
    tm = Mp8 if Mp8 <= 1024 else 512

    def footprint(tm_, tn_, tk_):
        # double-buffered x / W / bias blocks + resident f32 output/acc (x2
        # to be conservative about output buffering).
        return (2 * (tm_ * tk_ + tn_ * tk_ + tn_) * itemsize
                + 2 * tm_ * tn_ * 4)

    # Shrink (tk, then tn, then tm) until the estimate fits the VMEM budget.
    while footprint(tm, tn, tk) > budget:
        if tk > 256:
            tk = max(256, _round_up(tk // 2, 128))
        elif tn > 256:
            tn = max(256, _round_up(tn // 2, 128))
        elif tm > 256:
            tm = max(256, _round_up(tm // 2, 8))
        else:
            break

    # Keep at least one "parallel" grid axis with >= 2 tiles for 2-TC chips
    # (v7x) when the whole problem would otherwise be a single (i, j) tile.
    if tm >= Mp8 and tn >= Np128 and Np128 >= 256 and Np128 % 256 == 0:
        tn = Np128 // 2

    return tm, tn, tk


# ---------------------------------------------------------------------------
# Wrapper
# ---------------------------------------------------------------------------
def fullconnection_forward(x, weight, bias):
    """Fused y = LeakyReLU(0.2)(x @ weight.T + bias).

    x:      (..., K)   arbitrary leading dims (flattened to rows)
    weight: (N, K)     PyTorch nn.Linear layout (no transpose performed)
    bias:   (N,)
    """
    orig_shape = x.shape
    K = orig_shape[-1]
    N = weight.shape[0]
    M = 1
    for d in orig_shape[:-1]:
        M *= d
    x2 = x.reshape(M, K)

    itemsize = jnp.dtype(x.dtype).itemsize
    budget = _vmem_budget_bytes()
    tm, tn, tk = _choose_tiles(M, K, N, itemsize, budget)

    Mp = _round_up(M, tm)
    Kp = _round_up(K, tk)
    Np = _round_up(N, tn)

    # Pad only when needed (zero padding is exact for the contraction; padded
    # bias columns give LeakyReLU(0)=0 and are sliced away).
    if (Mp, Kp) != (M, K):
        x_p = jnp.zeros((Mp, Kp), x.dtype).at[:M, :K].set(x2)
    else:
        x_p = x2
    if (Np, Kp) != (N, K):
        w_p = jnp.zeros((Np, Kp), weight.dtype).at[:N, :K].set(weight)
    else:
        w_p = weight
    if Np != N:
        b_p = jnp.zeros((1, Np), bias.dtype).at[0, :N].set(bias)
    else:
        b_p = bias.reshape(1, N)

    grid = (Mp // tm, Np // tn, Kp // tk)
    gi, gj, gk = grid

    # HBM traffic accounting for grid re-reads of x (per j-tile) and W (per
    # i-tile); advisory only.
    cost = pl.CostEstimate(
        flops=2 * Mp * Kp * Np,
        transcendentals=0,
        bytes_accessed=(gj * Mp * Kp + gi * Kp * Np + Np + Mp * Np) * itemsize,
    )

    out_is_f32 = jnp.dtype(x.dtype) == jnp.dtype(jnp.float32)
    kernel = _fc_kernel_f32 if out_is_f32 else _fc_kernel_acc
    scratch = [] if out_is_f32 else [pltpu.VMEM((tm, tn), jnp.float32)]

    out_p = pl.pallas_call(
        kernel,
        out_shape=jax.ShapeDtypeStruct((Mp, Np), x.dtype),
        grid_spec=pltpu.PrefetchScalarGridSpec(
            num_scalar_prefetch=0,
            grid=grid,
            in_specs=[
                pl.BlockSpec((tm, tk), lambda i, j, k: (i, k)),   # activations
                pl.BlockSpec((tn, tk), lambda i, j, k: (j, k)),   # weight (N,K)
                pl.BlockSpec((1, tn), lambda i, j, k: (0, j)),    # bias row
            ],
            out_specs=pl.BlockSpec((tm, tn), lambda i, j, k: (i, j)),
            scratch_shapes=scratch,
        ),
        compiler_params=pltpu.CompilerParams(
            dimension_semantics=("parallel", "parallel", "arbitrary"),
            vmem_limit_bytes=budget,
        ),
        cost_estimate=cost,
    )(x_p, w_p, b_p)

    if (Mp, Np) != (M, N):
        out_p = out_p[:M, :N]
    return out_p.reshape(*orig_shape[:-1], N)


def reference_forward(x, weight, bias):
    """Pure-JAX reference of the PyTorch Fullconnection forward ('lrelu')."""
    y = jnp.dot(x.astype(jnp.float32), weight.T.astype(jnp.float32),
                precision=lax.Precision.HIGHEST) + bias.astype(jnp.float32)
    return jnp.where(y > 0, y, NEG_SLOPE * y)


if __name__ == "__main__":
    key = jax.random.PRNGKey(0)
    k_x, k_w, k_b = jax.random.split(key, 3)

    # Small shapes consistent with the module: batch=2, seq=8, hidden 32 -> 64.
    batch, seq, in_dim, out_dim = 2, 8, 32, 64
    x = jax.random.normal(k_x, (batch, seq, in_dim), dtype=jnp.float32)

    # nn.Linear default init: U[-1/sqrt(K), 1/sqrt(K)].
    bound = 1.0 / (in_dim ** 0.5)
    weight = jax.random.uniform(k_w, (out_dim, in_dim), jnp.float32, -bound, bound)
    bias = jax.random.uniform(k_b, (out_dim,), jnp.float32, -bound, bound)

    out = fullconnection_forward(x, weight, bias)
    jax.block_until_ready(out)

    ref = reference_forward(x, weight, bias)
    assert out.shape == (batch, seq, out_dim)
    assert jnp.allclose(out, ref, atol=2e-3, rtol=2e-3), "mismatch vs reference"

    # TODO(synk): 'prelu' variant needs a learned slope parameter; only the
    # default 'lrelu' (and trivially 'relu'/'none') epilogues are fused here.
    print("KERNEL_OK")
</pallas_src>

<mosaic_0001>
module attributes {stable_mosaic.version = 11 : i64} {
  func.func @_fc_kernel_f32(%arg0: i32, %arg1: i32, %arg2: i32, %arg3: memref<16x128xf32, #tpu.memory_space<vmem>>, %arg4: memref<128x128xf32, #tpu.memory_space<vmem>>, %arg5: memref<1x128xf32, #tpu.memory_space<vmem>>, %arg6: memref<16x128xf32, #tpu.memory_space<vmem>>) attributes {dimension_semantics = [#tpu.dimension_semantics<parallel>, #tpu.dimension_semantics<parallel>, #tpu.dimension_semantics<arbitrary>], iteration_bounds = array<i64: 1, 1, 1>, scalar_prefetch = 0 : i64, scratch_operands = 0 : i64, tpu.core_type = #tpu.core_type<tc>, window_params = [{transform_indices = @transform_0, window_bounds = array<i64: 16, 128>}, {transform_indices = @transform_1, window_bounds = array<i64: 128, 128>}, {transform_indices = @transform_2, window_bounds = array<i64: 1, 128>}, {transform_indices = @transform_3, window_bounds = array<i64: 16, 128>}]} {
    %c0_i32 = arith.constant 0 : i32
    %0 = arith.cmpi eq, %arg2, %c0_i32 : i32
    %1 = arith.extui %0 : i1 to i32
    %c0_i32_0 = arith.constant 0 : i32
    %2 = arith.cmpi ne, %1, %c0_i32_0 : i32
    scf.if %2 {
      %cst_10 = arith.constant 0.000000e+00 : f32
      %12 = vector.broadcast %cst_10 : f32 to vector<16x128xf32>
      %c0_11 = arith.constant 0 : index
      %c0_12 = arith.constant 0 : index
      %13 = vector.load %arg6[%c0_11, %c0_12] : memref<16x128xf32, #tpu.memory_space<vmem>>, vector<16x128xf32>
      tpu.vector_store %arg6[%c0_11, %c0_12], %12 {strides = array<i32>} : memref<16x128xf32, #tpu.memory_space<vmem>>, vector<16x128xf32>,
    } else {
    }
    %c0 = arith.constant 0 : index
    %c0_1 = arith.constant 0 : index
    %3 = vector.load %arg6[%c0, %c0_1] : memref<16x128xf32, #tpu.memory_space<vmem>>, vector<16x128xf32>
    %c0_2 = arith.constant 0 : index
    %c0_3 = arith.constant 0 : index
    %4 = vector.load %arg3[%c0_2, %c0_3] : memref<16x128xf32, #tpu.memory_space<vmem>>, vector<16x128xf32>
    %c0_4 = arith.constant 0 : index
    %c0_5 = arith.constant 0 : index
    %5 = vector.load %arg4[%c0_4, %c0_5] : memref<128x128xf32, #tpu.memory_space<vmem>>, vector<128x128xf32>
    %cst = arith.constant dense<0.000000e+00> : vector<16x128xf32>
    %6 = tpu.matmul %4, %5, %cst {dimension_numbers = #tpu.dot_dimension_numbers<[1], [1], [0], [0], [0, 0, 1, 0], [], []>} : vector<16x128xf32>, vector<128x128xf32>, vector<16x128xf32> -> vector<16x128xf32>
    %7 = arith.addf %3, %6 : vector<16x128xf32>
    %c0_6 = arith.constant 0 : index
    %c0_7 = arith.constant 0 : index
    %8 = vector.load %arg6[%c0_6, %c0_7] : memref<16x128xf32, #tpu.memory_space<vmem>>, vector<16x128xf32>
    tpu.vector_store %arg6[%c0_6, %c0_7], %7 {strides = array<i32>} : memref<16x128xf32, #tpu.memory_space<vmem>>, vector<16x128xf32>,
    %c0_i32_8 = arith.constant 0 : i32
    %9 = arith.cmpi eq, %arg2, %c0_i32_8 : i32
    %10 = arith.extui %9 : i1 to i32
    %c0_i32_9 = arith.constant 0 : i32
    %11 = arith.cmpi ne, %10, %c0_i32_9 : i32
    scf.if %11 {
      %c0_10 = arith.constant 0 : index
      %c0_11 = arith.constant 0 : index
      %12 = vector.load %arg6[%c0_10, %c0_11] : memref<16x128xf32, #tpu.memory_space<vmem>>, vector<16x128xf32>
      %c0_12 = arith.constant 0 : index
      %c0_13 = arith.constant 0 : index
      %13 = vector.load %arg5[%c0_12, %c0_13] : memref<1x128xf32, #tpu.memory_space<vmem>>, vector<1x128xf32>
      %14 = vector.broadcast %13 : vector<1x128xf32> to vector<16x128xf32>
      %15 = arith.addf %12, %14 : vector<16x128xf32>
      %cst_14 = arith.constant 0.000000e+00 : f32
      %16 = vector.broadcast %cst_14 : f32 to vector<16x128xf32>
      %17 = arith.cmpf ogt, %15, %16 : vector<16x128xf32>
      %cst_15 = arith.constant 2.000000e-01 : f32
      %18 = vector.broadcast %cst_15 : f32 to vector<16x128xf32>
      %19 = arith.mulf %18, %15 : vector<16x128xf32>
      %20 = arith.select %17, %15, %19 : vector<16x128xi1>, vector<16x128xf32>
      %c0_16 = arith.constant 0 : index
      %c0_17 = arith.constant 0 : index
      %21 = vector.load %arg6[%c0_16, %c0_17] : memref<16x128xf32, #tpu.memory_space<vmem>>, vector<16x128xf32>
      tpu.vector_store %arg6[%c0_16, %c0_17], %20 {strides = array<i32>} : memref<16x128xf32, #tpu.memory_space<vmem>>, vector<16x128xf32>,
    } else {
    }
    return
  }
  func.func @transform_0(%arg0: i32, %arg1: i32, %arg2: i32) -> (i32, i32) {
    %c0_i32 = arith.constant 0 : i32
    return %arg0, %arg2 : i32, i32
  }
  func.func @transform_1(%arg0: i32, %arg1: i32, %arg2: i32) -> (i32, i32) {
    %c0_i32 = arith.constant 0 : i32
    return %arg1, %arg2 : i32, i32
  }
  func.func @transform_2(%arg0: i32, %arg1: i32, %arg2: i32) -> (i32, i32) {
    %c0_i32 = arith.constant 0 : i32
    %c0_i32_0 = arith.constant 0 : i32
    return %c0_i32, %arg1 : i32, i32
  }
  func.func @transform_3(%arg0: i32, %arg1: i32, %arg2: i32) -> (i32, i32) {
    %c0_i32 = arith.constant 0 : i32
    return %arg0, %arg1 : i32, i32
  }
}

</mosaic_0001>

<llo_original>
// kernel: tpu_custom_call.1
$region0: #{tpu_custom_call.1}
  #allocation0 [shape = 'u32[]', space=smem, size = 0x4, offset = 0x4, fixed_abs, tag = 'smem constant byte address 0x4 - core index']
  #allocation1 [shape = 'u32[144,128]{1,0:T(1,128)}', space=vmem, size = 0x12000, scoped, tag = 'internal scratch']
  %s0 = inlined_call_operand.hbm [shape: f32[16,128], index: 0, kind: input, shape index: {}]
  %s1 = inlined_call_operand.hbm [shape: f32[128,128], index: 1, kind: input, shape index: {}]
  %s2 = inlined_call_operand.vmem [shape: f32[1,128], index: 2, kind: input, shape index: {}]
  %s3 = inlined_call_operand.hbm [shape: f32[16,128], index: 3, kind: output, shape index: {}]
  %s4 = sld [smem:[#allocation0]]
  $region38: #{tpu_custom_call.1} parent=0
    _
  %s6 = ssub.s32 1, %s4
  %s7 = scalar_select 0, %s6, %s4
  $region1: #{tpu_custom_call.1} parent=0
    #allocation2 [shape = 'u8[8192]{0}', space=vmem, size = 0x2000, scoped, tag = 'input window, operand 0, single buffered']
    #allocation3 [shape = 's32[1]{0}', space=sflag, size = 0x4, scoped, tag = 'scoped memory for tpu_custom_call.1']
    #allocation4 [shape = 's32[1]{0}', space=sflag, size = 0x4, scoped, tag = 'scoped memory for tpu_custom_call.1']
    #allocation5 [shape = 'u8[65536]{0}', space=vmem, size = 0x10000, scoped, tag = 'input window, operand 1, single buffered']
    #allocation6 [shape = 's32[1]{0}', space=sflag, size = 0x4, scoped, tag = 'scoped memory for tpu_custom_call.1']
    #allocation7 [shape = 'u8[8192]{0}', space=vmem, size = 0x2000, scoped, tag = 'output window, operand 0, single buffered']
    %8 = vsyncpa [#allocation3], 0
    %9 = vsyncpa [#allocation6], 0
    %10 = vsyncpa [#allocation4], 0
    // Predicated region
    $region2: #{tpu_custom_call.1} parent=1 // pred_check
      _
    $region3: #{tpu_custom_call.1} parent=1 // pred_check_branch
      %12 = sbr.rel (0) target = $region5
    $region4: #{tpu_custom_call.1} parent=1 // pred_region
      %s14 = ssub.s32 256, 256
      %15 = vsyncadd [#allocation3], %s14
      %s16 = sshll.u32 [#allocation2], 4
      %s17 = int_to_ptr.vmem [resolvable:$true] %s16
      %22 = dma.hbm_to_vmem [thread:$0]  %s0, 256, %s17, [#allocation3], 128, 128, 8
    $region5: #{tpu_custom_call.1} parent=1 // pred_fallthru
      _
    // Predicated region
    $region6: #{tpu_custom_call.1} parent=1 // pred_check
      _
    $region7: #{tpu_custom_call.1} parent=1 // pred_check_branch
      %24 = sbr.rel (0) target = $region9
    $region8: #{tpu_custom_call.1} parent=1 // pred_region
      %s26 = ssub.s32 2048, 2048
      %27 = vsyncadd [#allocation6], %s26
      %s28 = sshll.u32 [#allocation5], 4
      %s29 = int_to_ptr.vmem [resolvable:$true] %s28
      %34 = dma.hbm_to_vmem [thread:$0]  %s1, 2048, %s29, [#allocation6], 128, 128, 8
    $region9: #{tpu_custom_call.1} parent=1 // pred_fallthru
      _
    // Predicated region
    $region10: #{tpu_custom_call.1} parent=1 // pred_check
      _
    $region11: #{tpu_custom_call.1} parent=1 // pred_check_branch
      %36 = sbr.rel (0) target = $region13
    $region12: #{tpu_custom_call.1} parent=1 // pred_region
      _
    $region13: #{tpu_custom_call.1} parent=1 // pred_fallthru
      _
    // Predicated region
    $region14: #{tpu_custom_call.1} parent=1 // pred_check
      _
    $region15: #{tpu_custom_call.1} parent=1 // pred_check_branch
      %38 = sbr.rel (0) target = $region17
    $region16: #{tpu_custom_call.1} parent=1 // pred_region
      %39 = dma.done [#allocation3], 256
    $region17: #{tpu_custom_call.1} parent=1 // pred_fallthru
      _
    // Predicated region
    $region18: #{tpu_custom_call.1} parent=1 // pred_check
      _
    $region19: #{tpu_custom_call.1} parent=1 // pred_check_branch
      %41 = sbr.rel (0) target = $region21
    $region20: #{tpu_custom_call.1} parent=1 // pred_region
      %42 = dma.done [#allocation6], 2048
    $region21: #{tpu_custom_call.1} parent=1 // pred_fallthru
      _
    %p43 = scmp.eq.s32.totalorder 0, 0
    // Predicated region
    $region22: #{tpu_custom_call.1} parent=1 // pred_check
      %p44 = pneg %p43
    $region23: #{tpu_custom_call.1} parent=1 // pred_check_branch
      %46 = sbr.rel (%p44) target = $region25
    $region24: #{tpu_custom_call.1} parent=1 // pred_region
      %47 = vst [vmem:[#allocation7] sm:$0xff] 0.0
      %48 = vst [vmem:[#allocation7 + $0x8] sm:$0xff] 0.0
    $region25: #{tpu_custom_call.1} parent=1 // pred_fallthru
      _
    %v49 = vld [vmem:[#allocation7] sm:$0xff]
    %v50 = vld [vmem:[#allocation7 + $0x8] sm:$0xff]
    %v51 = vld [vmem:[#allocation2] sm:$0xff]
    %v52 = vld [vmem:[#allocation2 + $0x8] sm:$0xff]
    %v53 = vld [vmem:[#allocation5] sm:$0xff]
    %v54 = vld [vmem:[#allocation5 + $0x8] sm:$0xff]
    %v55 = vld [vmem:[#allocation5 + $0x10] sm:$0xff]
    %v56 = vld [vmem:[#allocation5 + $0x18] sm:$0xff]
    %v57 = vld [vmem:[#allocation5 + $0x20] sm:$0xff]
    %v58 = vld [vmem:[#allocation5 + $0x28] sm:$0xff]
    %v59 = vld [vmem:[#allocation5 + $0x30] sm:$0xff]
    %v60 = vld [vmem:[#allocation5 + $0x38] sm:$0xff]
    %v61 = vld [vmem:[#allocation5 + $0x40] sm:$0xff]
    %v62 = vld [vmem:[#allocation5 + $0x48] sm:$0xff]
    %v63 = vld [vmem:[#allocation5 + $0x50] sm:$0xff]
    %v64 = vld [vmem:[#allocation5 + $0x58] sm:$0xff]
    %v65 = vld [vmem:[#allocation5 + $0x60] sm:$0xff]
    %v66 = vld [vmem:[#allocation5 + $0x68] sm:$0xff]
    %v67 = vld [vmem:[#allocation5 + $0x70] sm:$0xff]
    %v68 = vld [vmem:[#allocation5 + $0x78] sm:$0xff]
    %69 = vmatprep.subr.mxu0 0.0
    %70 = vmatpush1.xpose.msra.mxu0 %v53
    %71 = vmatprep.subr.mxu0 0.0
    %72 = vmatpush1.xpose.msra.mxu0 %v54
    %73 = vmatprep.subr.mxu0 0.0
    %74 = vmatpush1.xpose.msra.mxu0 %v55
    %75 = vmatprep.subr.mxu0 0.0
    %76 = vmatpush1.xpose.msra.mxu0 %v56
    %77 = vmatprep.subr.mxu0 0.0
    %78 = vmatpush1.xpose.msra.mxu0 %v57
    %79 = vmatprep.subr.mxu0 0.0
    %80 = vmatpush1.xpose.msra.mxu0 %v58
    %81 = vmatprep.subr.mxu0 0.0
    %82 = vmatpush1.xpose.msra.mxu0 %v59
    %83 = vmatprep.subr.mxu0 0.0
    %84 = vmatpush1.xpose.msra.mxu0 %v60
    %85 = vmatprep.subr.mxu0 0.0
    %86 = vmatpush1.xpose.msra.mxu0 %v61
    %87 = vmatprep.subr.mxu0 0.0
    %88 = vmatpush1.xpose.msra.mxu0 %v62
    %89 = vmatprep.subr.mxu0 0.0
    %90 = vmatpush1.xpose.msra.mxu0 %v63
    %91 = vmatprep.subr.mxu0 0.0
    %92 = vmatpush1.xpose.msra.mxu0 %v64
    %93 = vmatprep.subr.mxu0 0.0
    %94 = vmatpush1.xpose.msra.mxu0 %v65
    %95 = vmatprep.subr.mxu0 0.0
    %96 = vmatpush1.xpose.msra.mxu0 %v66
    %97 = vmatprep.subr.mxu0 0.0
    %98 = vmatpush1.xpose.msra.mxu0 %v67
    %99 = vmatprep.subr.mxu0 0.0
    %100 = vmatpush1.xpose.msra.mxu0 %v68
    %101 = vmatprep.subr.mxu0 0.0
    %102 = vmatpush1.xpose.msra.mxu0 0.0
    %103 = vmatprep.subr.mxu0 0.0
    %104 = vmatpush1.xpose.msra.mxu0 0.0
    %105 = vmatprep.subr.mxu0 0.0
    %106 = vmatpush1.xpose.msra.mxu0 0.0
    %107 = vmatprep.subr.mxu0 0.0
    %108 = vmatpush1.xpose.msra.mxu0 0.0
    %109 = vmatprep.subr.mxu0 0.0
    %110 = vmatpush1.xpose.msra.mxu0 0.0
    %111 = vmatprep.subr.mxu0 0.0
    %112 = vmatpush1.xpose.msra.mxu0 0.0
    %113 = vmatprep.subr.mxu0 0.0
    %114 = vmatpush1.xpose.msra.mxu0 0.0
    %115 = vmatprep.subr.mxu0 0.0
    %116 = vmatpush1.xpose.msra.mxu0 0.0
    %117 = vmatprep.subr.mxu0 0.0
    %118 = vmatpush1.xpose.msra.mxu0 0.0
    %119 = vmatprep.subr.mxu0 0.0
    %120 = vmatpush1.xpose.msra.mxu0 0.0
    %121 = vmatprep.subr.mxu0 0.0
    %122 = vmatpush1.xpose.msra.mxu0 0.0
    %123 = vmatprep.subr.mxu0 0.0
    %124 = vmatpush1.xpose.msra.mxu0 0.0
    %125 = vmatprep.subr.mxu0 0.0
    %126 = vmatpush1.xpose.msra.mxu0 0.0
    %127 = vmatprep.subr.mxu0 0.0
    %128 = vmatpush1.xpose.msra.mxu0 0.0
    %129 = vmatprep.subr.mxu0 0.0
    %130 = vmatpush1.xpose.msra.mxu0 0.0
    %131 = vmatprep.subr.mxu0 0.0
    %132 = vmatpush1.xpose.msra.mxu0 0.0
    %133 = vmatprep.mubr.f32.mxu0 0.0
    %134 = vmatmul.mubr.f32.gmra.mrb[0].mxu0 %v51
    %v135 = vpop.f32.mrb[0].mxu0
    %v136 = vadd.f32 0.0, %v135
    %v137 = vpop.f32.mrb[0].mxu0
    %138 = vmatprep.mubr.f32.mxu0 0.0
    %139 = vmatmul.mubr.f32.gmra.mrb[0].mxu0 %v52
    %v140 = vpop.f32.mrb[0].mxu0
    %v141 = vadd.f32 0.0, %v140
    %v142 = vpop.f32.mrb[0].mxu0
    %143 = vdwg.mxu0
    %v144 = vadd.f32 %v49, %v136
    %v145 = vadd.f32 %v50, %v141
    %146 = vst [vmem:[#allocation7] sm:$0xff] %v144
    %147 = vst [vmem:[#allocation7 + $0x8] sm:$0xff] %v145
    // Predicated region
    $region26: #{tpu_custom_call.1} parent=1 // pred_check
      %p148 = pneg %p43
    $region27: #{tpu_custom_call.1} parent=1 // pred_check_branch
      %150 = sbr.rel (%p148) target = $region29
    $region28: #{tpu_custom_call.1} parent=1 // pred_region
      %v151 = vld [vmem:[#allocation7] sm:$0xff]
      %v152 = vld [vmem:[#allocation7 + $0x8] sm:$0xff]
      %v153 = vld [vmem:[%s2] sm:$0x1]
      %v155 = vlaneseq
      %v156 = vshrl.u32 %v155, 7
      %v157 = vsub.s32 0, %v156
      %v158 = vrot.slane %v153, %v157
      %v160 = vadd.f32 %v151, %v158
      %v161 = vadd.f32 %v152, %v158
      %vm162 = vcmp.gt.f32.partialorder %v160, 0.0
      %vm163 = vcmp.gt.f32.partialorder %v161, 0.0
      %v164 = vmul.f32 %v160, 0.2
      %v165 = vmul.f32 %v161, 0.2
      %v166 = vsel %vm162, %v160, %v164
      %v167 = vsel %vm163, %v161, %v165
      %168 = vst [vmem:[#allocation7] sm:$0xff] %v166
      %169 = vst [vmem:[#allocation7 + $0x8] sm:$0xff] %v167
    $region29: #{tpu_custom_call.1} parent=1 // pred_fallthru
      _
    // Predicated region
    $region30: #{tpu_custom_call.1} parent=1 // pred_check
      _
    $region31: #{tpu_custom_call.1} parent=1 // pred_check_branch
      %171 = sbr.rel (0) target = $region33
    $region32: #{tpu_custom_call.1} parent=1 // pred_region
      %s173 = ssub.s32 256, 256
      %174 = vsyncadd [#allocation4], %s173
      %s175 = sshll.u32 [#allocation7], 4
      %s176 = int_to_ptr.vmem [resolvable:$true] %s175
      %181 = dma.vmem_to_hbm [thread:$0]  %s176, 256, %s3, [#allocation4], 128, 128, 8
    $region33: #{tpu_custom_call.1} parent=1 // pred_fallthru
      _
    // Predicated region
    $region34: #{tpu_custom_call.1} parent=1 // pred_check
      _
    $region35: #{tpu_custom_call.1} parent=1 // pred_check_branch
      %183 = sbr.rel (0) target = $region37
    $region36: #{tpu_custom_call.1} parent=1 // pred_region
      %184 = dma.done [#allocation4], 256
    $region37: #{tpu_custom_call.1} parent=1 // pred_fallthru
      _
    %185 = vsyncpa [#allocation3], 1
    %186 = vsyncpa [#allocation6], 1
    %187 = vsyncpa [#allocation4], 1

</llo_original>
